<compile_context>
chip_gen: v7x
topology: tpu7x:2x2x1
jax: 0.10.0
libtpu: 0.0.40
codegen_flags: <defaults>
</compile_context>

<pallas_src>
import jax
import jax.numpy as jnp
from jax.experimental import pallas as pl
from jax.experimental.pallas import tpu as pltpu


_NORM_EPS = 1e-12  # matches torch.nn.functional.normalize default

_TILE_CANDIDATES = (1024, 512, 256, 128, 64, 32, 16, 8)

_FWD_CACHE = {}        # (B, D, Dp, tile_b, x_dtype, w_dtype) -> jitted forward
_VMEM_BUDGET_CACHE = None


def _round_up(x, m):
    return ((x + m - 1) // m) * m


def _vmem_budget():
    """Per-generation VMEM budget (bytes) for this kernel, queried once."""
    global _VMEM_BUDGET_CACHE
    if _VMEM_BUDGET_CACHE is None:
        cap = 64 << 20  # conservative default = v7x per-TC VMEM
        try:
            cap = int(pltpu.get_tpu_info().vmem_capacity_bytes)
        except Exception:
            pass
        # leave headroom for compiler scratch; v7x: 48 MiB, v5e/v6e: 112 MiB
        _VMEM_BUDGET_CACHE = int(min(cap - (16 << 20), 112 << 20))
    return _VMEM_BUDGET_CACHE


def _pale_linear_kernel(x_ref, wt_ref, b_ref, o_ref):
    # x_ref : (TB, D)    tile of source features (native dtype)
    # wt_ref: (D, Dp)    W^T, output columns zero-padded to Dp (resident)
    # b_ref : (1, Dp)    bias, f32, zero-padded
    # o_ref : (TB, Dp)   L2-normalized mapped features
    x = x_ref[...]
    wt = wt_ref[...]
    if x.dtype != wt.dtype:
        x = x.astype(wt.dtype)                  # per-tile cast (bf16 weights)
    y = jnp.dot(x, wt, preferred_element_type=jnp.float32)   # MXU, f32 acc
    y = y + b_ref[...]                                        # bias already f32

    # F.normalize(y, dim=1): y / max(||y||, eps) == y * rsqrt(max(sum y^2, eps^2))
    # Padded output columns are exactly zero, so the row norm is unaffected.
    sq_sum = jnp.sum(y * y, axis=1, keepdims=True)
    inv = jax.lax.rsqrt(jnp.maximum(sq_sum, _NORM_EPS * _NORM_EPS))  # EUP
    o_ref[...] = (y * inv).astype(o_ref.dtype)


def _pick_tile_b(B, D, Dp, x_dtype, w_dtype):
    """Largest batch tile that fits the VMEM budget, preferring an even grid."""
    budget = _vmem_budget()
    x_it = jnp.dtype(x_dtype).itemsize
    w_it = jnp.dtype(w_dtype).itemsize
    # Constant-index W^T / bias: default pipelining keeps at most 2 copies.
    fixed = 2 * D * Dp * w_it + 2 * Dp * 4
    bmax = _round_up(max(B, 1), 8)
    fitting = []
    for t in _TILE_CANDIDATES:
        if t > bmax:
            continue
        tiles = 2 * t * (D + Dp) * x_it          # x + out tiles, double-buffered
        if fixed + tiles + (4 << 20) <= budget:
            fitting.append(t)
    if not fitting:
        fitting = [8]
    # Prefer an even number of grid steps so the "parallel" batch axis splits
    # evenly across both v7x TensorCores; grid == 1 is also fine.
    for t in fitting:
        g = pl.cdiv(B, t)
        if g == 1 or g % 2 == 0:
            return t
    return fitting[0]


def _build_forward(B, D, Dp, tile_b, x_dtype, w_dtype):
    grid = (pl.cdiv(B, tile_b),)

    x_it = jnp.dtype(x_dtype).itemsize
    w_it = jnp.dtype(w_dtype).itemsize
    footprint = (
        2 * D * Dp * w_it            # W^T (constant block, <=2 copies)
        + 2 * Dp * 4                 # bias
        + 2 * tile_b * (D + Dp) * x_it  # x + out tiles, double-buffered
    )
    vmem_limit = int(min(max(int(1.5 * footprint) + (4 << 20), 16 << 20),
                         _vmem_budget()))

    call = pl.pallas_call(
        _pale_linear_kernel,
        out_shape=jax.ShapeDtypeStruct((B, Dp), x_dtype),
        grid_spec=pltpu.PrefetchScalarGridSpec(
            num_scalar_prefetch=0,
            grid=grid,
            in_specs=[
                pl.BlockSpec((tile_b, D), lambda i: (i, 0)),   # x tile
                pl.BlockSpec((D, Dp), lambda i: (0, 0)),       # W^T (resident)
                pl.BlockSpec((1, Dp), lambda i: (0, 0)),       # bias (resident)
            ],
            out_specs=pl.BlockSpec((tile_b, Dp), lambda i: (i, 0)),
        ),
        compiler_params=pltpu.CompilerParams(
            dimension_semantics=("parallel",),   # batch tiles shard across TCs
            vmem_limit_bytes=vmem_limit,
        ),
    )

    if Dp == D:
        fwd = call                                  # padding-free fast path
    else:
        def fwd(x, wt, b, _call=call, _d=D):
            return _call(x, wt, b)[:, :_d]
    return jax.jit(fwd)


def _get_forward_fn(B, D, Dp, tile_b, x_dtype, w_dtype):
    key = (B, D, Dp, tile_b, jnp.dtype(x_dtype).name, jnp.dtype(w_dtype).name)
    fn = _FWD_CACHE.get(key)
    if fn is None:
        fn = _build_forward(B, D, Dp, tile_b, x_dtype, w_dtype)
        _FWD_CACHE[key] = fn
    return fn


def prepare_pale_mapping_params(weight, bias, *, param_dtype=None):
    """One-time preprocessing of nn.Linear params (hoisted out of the forward).

    weight: (D, D) in PyTorch (out_features, in_features) layout; bias: (D,).
    Returns (W^T of shape (D, Dp), f32 bias of shape (1, Dp), D) with Dp a
    multiple of 128.  Only OUTPUT columns are zero-padded, so the input never
    needs padding and the padded output columns are exactly zero (row L2 norm
    is unchanged).  param_dtype=jnp.bfloat16 halves weight HBM/VMEM traffic
    (matmul still accumulates in f32).
    """
    d_out, d_in = weight.shape
    assert d_out == d_in, "PaleMappingLinear uses a square mapping"
    assert bias.shape == (d_out,)
    D = d_out
    Dp = _round_up(D, 128)                      # lane-dense output columns
    wt = weight.T                               # (in, out) so kernel does x @ W^T
    if Dp != D:
        wt = jnp.pad(wt, ((0, 0), (0, Dp - D)))
    if param_dtype is not None:
        wt = wt.astype(param_dtype)
    b = jnp.pad(bias, (0, Dp - D)).astype(jnp.float32).reshape(1, Dp)
    return wt, b, D


def pale_mapping_linear_forward(x, wt_padded, bias_padded, out_dim, *, tile_b=None):
    """x: (B, out_dim); wt_padded/bias_padded from prepare_pale_mapping_params."""
    B, D = x.shape
    Dp = wt_padded.shape[1]
    assert wt_padded.shape == (D, Dp)
    assert bias_padded.shape == (1, Dp)
    assert D == out_dim and D <= Dp

    if tile_b is None:
        tile_b = _pick_tile_b(B, D, Dp, x.dtype, wt_padded.dtype)
    tile_b = max(8, _round_up(int(tile_b), 8))

    fn = _get_forward_fn(B, D, Dp, tile_b, x.dtype, wt_padded.dtype)
    return fn(x, wt_padded, bias_padded)


def _reference_forward(x, weight, bias):
    y = x @ weight.T + bias
    norm = jnp.sqrt(jnp.sum(y * y, axis=1, keepdims=True))
    return y / jnp.maximum(norm, _NORM_EPS)


if __name__ == "__main__":
    key = jax.random.PRNGKey(0)
    batch = 8
    embedding_dim = 32

    k_x, k_w, k_b, k_x2 = jax.random.split(key, 4)

    # Deterministic "source embedding" features as the kernel input.
    x = jax.random.normal(k_x, (batch, embedding_dim), dtype=jnp.float32)

    # nn.Linear(embedding_dim, embedding_dim) params, PyTorch default
    # uniform(-1/sqrt(fan_in), 1/sqrt(fan_in)) init, generated in-script.
    bound = 1.0 / (embedding_dim ** 0.5)
    weight = jax.random.uniform(
        k_w, (embedding_dim, embedding_dim), jnp.float32, -bound, bound)
    bias = jax.random.uniform(
        k_b, (embedding_dim,), jnp.float32, -bound, bound)

    ref = _reference_forward(x, weight, bias)

    # --- f32 weights, single tile ---
    wt_p, b_p, D = prepare_pale_mapping_params(weight, bias)
    out = jax.block_until_ready(pale_mapping_linear_forward(x, wt_p, b_p, D))
    assert out.shape == (batch, embedding_dim)
    assert jnp.allclose(out, ref, atol=1e-5, rtol=1e-5), "f32 mismatch vs reference"

    # --- ragged batch (grid of 2 with a masked last tile) ---
    x2 = jax.random.normal(k_x2, (13, embedding_dim), dtype=jnp.float32)
    out2 = jax.block_until_ready(
        pale_mapping_linear_forward(x2, wt_p, b_p, D, tile_b=8))
    ref2 = _reference_forward(x2, weight, bias)
    assert out2.shape == (13, embedding_dim)
    assert jnp.allclose(out2, ref2, atol=1e-5, rtol=1e-5), "ragged mismatch"

    # --- bf16 weight storage (f32 accumulation), looser tolerance ---
    wt_bf, b_bf, _ = prepare_pale_mapping_params(
        weight, bias, param_dtype=jnp.bfloat16)
    out_bf = jax.block_until_ready(
        pale_mapping_linear_forward(x, wt_bf, b_bf, D))
    assert out_bf.shape == (batch, embedding_dim)
    assert jnp.allclose(out_bf, ref, atol=2e-2, rtol=2e-2), "bf16 mismatch"

    print("KERNEL_OK")
</pallas_src>

<mosaic_0001>
module attributes {stable_mosaic.version = 11 : i64} {
  func.func @_pale_linear_kernel(%arg0: i32, %arg1: memref<8x32xf32, #tpu.memory_space<vmem>>, %arg2: memref<32x128xf32, #tpu.memory_space<vmem>>, %arg3: memref<1x128xf32, #tpu.memory_space<vmem>>, %arg4: memref<8x128xf32, #tpu.memory_space<vmem>>) attributes {dimension_semantics = [#tpu.dimension_semantics<parallel>], iteration_bounds = array<i64: 1>, scalar_prefetch = 0 : i64, scratch_operands = 0 : i64, tpu.core_type = #tpu.core_type<tc>, window_params = [{transform_indices = @transform_0, window_bounds = array<i64: 8, 32>}, {pipeline_mode = #tpu.pipeline_mode<synchronous>, transform_indices = @transform_1, window_bounds = array<i64: 32, 128>}, {pipeline_mode = #tpu.pipeline_mode<synchronous>, transform_indices = @transform_2, window_bounds = array<i64: 1, 128>}, {transform_indices = @transform_3, window_bounds = array<i64: 8, 128>}]} {
    %c0 = arith.constant 0 : index
    %c0_0 = arith.constant 0 : index
    %0 = vector.load %arg1[%c0, %c0_0] : memref<8x32xf32, #tpu.memory_space<vmem>>, vector<8x32xf32>
    %c0_1 = arith.constant 0 : index
    %c0_2 = arith.constant 0 : index
    %1 = vector.load %arg2[%c0_1, %c0_2] : memref<32x128xf32, #tpu.memory_space<vmem>>, vector<32x128xf32>
    %cst = arith.constant dense<0.000000e+00> : vector<8x128xf32>
    %2 = tpu.matmul %0, %1, %cst {dimension_numbers = #tpu.dot_dimension_numbers<[1], [0], [0], [1], [0, 0, 1, 1], [], []>} : vector<8x32xf32>, vector<32x128xf32>, vector<8x128xf32> -> vector<8x128xf32>
    %c0_3 = arith.constant 0 : index
    %c0_4 = arith.constant 0 : index
    %3 = vector.load %arg3[%c0_3, %c0_4] : memref<1x128xf32, #tpu.memory_space<vmem>>, vector<1x128xf32>
    %4 = vector.broadcast %3 : vector<1x128xf32> to vector<8x128xf32>
    %5 = arith.addf %2, %4 : vector<8x128xf32>
    %6 = arith.mulf %5, %5 : vector<8x128xf32>
    %cst_5 = arith.constant dense<0.000000e+00> : vector<8xf32>
    %7 = vector.multi_reduction <add>, %6, %cst_5 [1] : vector<8x128xf32> to vector<8xf32>
    %8 = vector.shape_cast %7 : vector<8xf32> to vector<8x1xf32>
    %cst_6 = arith.constant 1.000000e-24 : f32
    %9 = vector.broadcast %cst_6 : f32 to vector<8x1xf32>
    %10 = arith.maximumf %8, %9 : vector<8x1xf32>
    %11 = math.rsqrt %10 : vector<8x1xf32>
    %12 = vector.broadcast %11 : vector<8x1xf32> to vector<8x128xf32>
    %13 = arith.mulf %5, %12 : vector<8x128xf32>
    %c0_7 = arith.constant 0 : index
    %c0_8 = arith.constant 0 : index
    %14 = vector.load %arg4[%c0_7, %c0_8] : memref<8x128xf32, #tpu.memory_space<vmem>>, vector<8x128xf32>
    tpu.vector_store %arg4[%c0_7, %c0_8], %13 {strides = array<i32>} : memref<8x128xf32, #tpu.memory_space<vmem>>, vector<8x128xf32>,
    return
  }
  func.func @transform_0(%arg0: i32) -> (i32, i32) {
    %c0_i32 = arith.constant 0 : i32
    %c0_i32_0 = arith.constant 0 : i32
    return %arg0, %c0_i32 : i32, i32
  }
  func.func @transform_1(%arg0: i32) -> (i32, i32) {
    %c0_i32 = arith.constant 0 : i32
    %c0_i32_0 = arith.constant 0 : i32
    %c0_i32_1 = arith.constant 0 : i32
    return %c0_i32, %c0_i32_0 : i32, i32
  }
  func.func @transform_2(%arg0: i32) -> (i32, i32) {
    %c0_i32 = arith.constant 0 : i32
    %c0_i32_0 = arith.constant 0 : i32
    %c0_i32_1 = arith.constant 0 : i32
    return %c0_i32, %c0_i32_0 : i32, i32
  }
  func.func @transform_3(%arg0: i32) -> (i32, i32) {
    %c0_i32 = arith.constant 0 : i32
    %c0_i32_0 = arith.constant 0 : i32
    return %arg0, %c0_i32 : i32, i32
  }
}

</mosaic_0001>

<llo_original>
// kernel: fwd.1
$region0: #{fwd.1}
  #allocation0 [shape = 'u32[]', space=smem, size = 0x4, offset = 0x4, fixed_abs, tag = 'smem constant byte address 0x4 - core index']
  #allocation1 [shape = 'u32[144,128]{1,0:T(1,128)}', space=vmem, size = 0x12000, scoped, tag = 'internal scratch']
  %s0 = inlined_call_operand.hbm [shape: f32[8,32], index: 0, kind: input, shape index: {}]
  %s1 = inlined_call_operand.hbm [shape: f32[32,128], index: 1, kind: input, shape index: {}]
  %s2 = inlined_call_operand.vmem [shape: f32[1,128], index: 2, kind: input, shape index: {}]
  %s3 = inlined_call_operand.hbm [shape: f32[8,128], index: 3, kind: output, shape index: {}]
  %s4 = sld [smem:[#allocation0]]
  $region30: #{fwd.1} parent=0
    _
  %s6 = ssub.s32 1, %s4
  %s7 = scalar_select 0, %s6, %s4
  $region1: #{fwd.1} parent=0
    #allocation2 [shape = 'u8[4096]{0}', space=vmem, size = 0x1000, scoped, tag = 'input window, operand 0, single buffered']
    #allocation3 [shape = 's32[1]{0}', space=sflag, size = 0x4, scoped, tag = 'scoped memory for fwd.1']
    #allocation4 [shape = 's32[1]{0}', space=sflag, size = 0x4, scoped, tag = 'scoped memory for fwd.1']
    #allocation5 [shape = 'u8[16384]{0}', space=vmem, size = 0x4000, scoped, tag = 'input window, operand 1, single buffered']
    #allocation6 [shape = 's32[1]{0}', space=sflag, size = 0x4, scoped, tag = 'scoped memory for fwd.1']
    #allocation7 [shape = 'u8[4096]{0}', space=vmem, size = 0x1000, scoped, tag = 'output window, operand 0, single buffered']
    %8 = vsyncpa [#allocation3], 0
    %9 = vsyncpa [#allocation6], 0
    %10 = vsyncpa [#allocation4], 0
    // Predicated region
    $region2: #{fwd.1} parent=1 // pred_check
      _
    $region3: #{fwd.1} parent=1 // pred_check_branch
      %12 = sbr.rel (0) target = $region5
    $region4: #{fwd.1} parent=1 // pred_region
      %s14 = ssub.s32 128, 128
      %15 = vsyncadd [#allocation3], %s14
      %s17 = sshll.u32 [#allocation2], 4
      %s18 = int_to_ptr.vmem [resolvable:$true] %s17
      %20 = dma.hbm_to_vmem [thread:$0]  %s0, 128, %s18, [#allocation3]
    $region5: #{fwd.1} parent=1 // pred_fallthru
      _
    // Predicated region
    $region6: #{fwd.1} parent=1 // pred_check
      _
    $region7: #{fwd.1} parent=1 // pred_check_branch
      %22 = sbr.rel (0) target = $region9
    $region8: #{fwd.1} parent=1 // pred_region
      %s24 = ssub.s32 512, 512
      %25 = vsyncadd [#allocation6], %s24
      %s26 = sshll.u32 [#allocation5], 4
      %s27 = int_to_ptr.vmem [resolvable:$true] %s26
      %32 = dma.hbm_to_vmem [thread:$0]  %s1, 512, %s27, [#allocation6], 128, 128, 8
    $region9: #{fwd.1} parent=1 // pred_fallthru
      _
    // Predicated region
    $region10: #{fwd.1} parent=1 // pred_check
      _
    $region11: #{fwd.1} parent=1 // pred_check_branch
      %34 = sbr.rel (0) target = $region13
    $region12: #{fwd.1} parent=1 // pred_region
      _
    $region13: #{fwd.1} parent=1 // pred_fallthru
      _
    // Predicated region
    $region14: #{fwd.1} parent=1 // pred_check
      _
    $region15: #{fwd.1} parent=1 // pred_check_branch
      %36 = sbr.rel (0) target = $region17
    $region16: #{fwd.1} parent=1 // pred_region
      %37 = dma.done [#allocation3], 128
    $region17: #{fwd.1} parent=1 // pred_fallthru
      _
    // Predicated region
    $region18: #{fwd.1} parent=1 // pred_check
      _
    $region19: #{fwd.1} parent=1 // pred_check_branch
      %39 = sbr.rel (0) target = $region21
    $region20: #{fwd.1} parent=1 // pred_region
      %40 = dma.done [#allocation6], 512
    $region21: #{fwd.1} parent=1 // pred_fallthru
      _
    %v41 = vld [vmem:[#allocation2] sm:$0xff]
    %v42 = vld [vmem:[#allocation5] sm:$0xff]
    %v43 = vld [vmem:[#allocation5 + $0x8] sm:$0xff]
    %v44 = vld [vmem:[#allocation5 + $0x10] sm:$0xff]
    %v45 = vld [vmem:[#allocation5 + $0x18] sm:$0xff]
    %v46 = vld [vmem:[%s2] sm:$0x1]
    %v48 = vlaneseq
    %v49 = vshrl.u32 %v48, 7
    %v50 = vsub.s32 0, %v49
    %v51 = vrot.slane %v46, %v50
    %vm53 = vcmask 261120
    %v55 = vsel %vm53, %v41, 0
    %57 = vmatprep.subr.mxu0 0.0
    %58 = vmatpush1.msra.mxu0 %v42
    %59 = vmatprep.subr.mxu0 0.0
    %60 = vmatpush1.msra.mxu0 %v43
    %61 = vmatprep.subr.mxu0 0.0
    %62 = vmatpush1.msra.mxu0 %v44
    %63 = vmatprep.subr.mxu0 0.0
    %64 = vmatpush1.msra.mxu0 %v45
    %65 = vmatprep.subr.mxu0 0.0
    %66 = vmatpush1.msra.mxu0 0.0
    %67 = vmatprep.subr.mxu0 0.0
    %68 = vmatpush1.msra.mxu0 0.0
    %69 = vmatprep.subr.mxu0 0.0
    %70 = vmatpush1.msra.mxu0 0.0
    %71 = vmatprep.subr.mxu0 0.0
    %72 = vmatpush1.msra.mxu0 0.0
    %73 = vmatprep.subr.mxu0 0.0
    %74 = vmatpush1.msra.mxu0 0.0
    %75 = vmatprep.subr.mxu0 0.0
    %76 = vmatpush1.msra.mxu0 0.0
    %77 = vmatprep.subr.mxu0 0.0
    %78 = vmatpush1.msra.mxu0 0.0
    %79 = vmatprep.subr.mxu0 0.0
    %80 = vmatpush1.msra.mxu0 0.0
    %81 = vmatprep.subr.mxu0 0.0
    %82 = vmatpush1.msra.mxu0 0.0
    %83 = vmatprep.subr.mxu0 0.0
    %84 = vmatpush1.msra.mxu0 0.0
    %85 = vmatprep.subr.mxu0 0.0
    %86 = vmatpush1.msra.mxu0 0.0
    %87 = vmatprep.subr.mxu0 0.0
    %88 = vmatpush1.msra.mxu0 0.0
    %89 = vmatprep.subr.mxu0 0.0
    %90 = vmatpush1.msra.mxu0 0.0
    %91 = vmatprep.subr.mxu0 0.0
    %92 = vmatpush1.msra.mxu0 0.0
    %93 = vmatprep.subr.mxu0 0.0
    %94 = vmatpush1.msra.mxu0 0.0
    %95 = vmatprep.subr.mxu0 0.0
    %96 = vmatpush1.msra.mxu0 0.0
    %97 = vmatprep.subr.mxu0 0.0
    %98 = vmatpush1.msra.mxu0 0.0
    %99 = vmatprep.subr.mxu0 0.0
    %100 = vmatpush1.msra.mxu0 0.0
    %101 = vmatprep.subr.mxu0 0.0
    %102 = vmatpush1.msra.mxu0 0.0
    %103 = vmatprep.subr.mxu0 0.0
    %104 = vmatpush1.msra.mxu0 0.0
    %105 = vmatprep.subr.mxu0 0.0
    %106 = vmatpush1.msra.mxu0 0.0
    %107 = vmatprep.subr.mxu0 0.0
    %108 = vmatpush1.msra.mxu0 0.0
    %109 = vmatprep.subr.mxu0 0.0
    %110 = vmatpush1.msra.mxu0 0.0
    %111 = vmatprep.subr.mxu0 0.0
    %112 = vmatpush1.msra.mxu0 0.0
    %113 = vmatprep.subr.mxu0 0.0
    %114 = vmatpush1.msra.mxu0 0.0
    %115 = vmatprep.subr.mxu0 0.0
    %116 = vmatpush1.msra.mxu0 0.0
    %117 = vmatprep.subr.mxu0 0.0
    %118 = vmatpush1.msra.mxu0 0.0
    %119 = vmatprep.subr.mxu0 0.0
    %120 = vmatpush1.msra.mxu0 0.0
    %121 = vmatprep.mubr.f32.mxu0 0.0
    %122 = vmatmul.mubr.f32.gmra.mrb[0].mxu0 %v55
    %v123 = vpop.f32.mrb[0].mxu0
    %v124 = vadd.f32 %v51, %v123
    %v125 = vpop.f32.mrb[0].mxu0
    %126 = vdwg.mxu0
    %v127 = vmul.f32 %v124, %v124
    %128 = vadd.xlane.f32.xlu0 %v127
    %v129 = vpop.xlane.xlu0 %128
    %v130 = vmax.f32 %v129, 1e-24
    %v131 = vrsqrt.pop %v130
    %v132 = vmul.f32 %v124, %v131
    %133 = vst [vmem:[#allocation7] sm:$0xff] %v132
    // Predicated region
    $region22: #{fwd.1} parent=1 // pred_check
      _
    $region23: #{fwd.1} parent=1 // pred_check_branch
      %135 = sbr.rel (0) target = $region25
    $region24: #{fwd.1} parent=1 // pred_region
      %s137 = ssub.s32 128, 128
      %138 = vsyncadd [#allocation4], %s137
      %s140 = sshll.u32 [#allocation7], 4
      %s141 = int_to_ptr.vmem [resolvable:$true] %s140
      %143 = dma.vmem_to_hbm [thread:$0]  %s141, 128, %s3, [#allocation4]
    $region25: #{fwd.1} parent=1 // pred_fallthru
      _
    // Predicated region
    $region26: #{fwd.1} parent=1 // pred_check
      _
    $region27: #{fwd.1} parent=1 // pred_check_branch
      %145 = sbr.rel (0) target = $region29
    $region28: #{fwd.1} parent=1 // pred_region
      %146 = dma.done [#allocation4], 128
    $region29: #{fwd.1} parent=1 // pred_fallthru
      _
    %147 = vsyncpa [#allocation3], 1
    %148 = vsyncpa [#allocation6], 1
    %149 = vsyncpa [#allocation4], 1

</llo_original>
